<compile_context>
chip_gen: v7x
topology: tpu7x:2x2x1
jax: 0.10.0
libtpu: 0.0.40
codegen_flags: <defaults>
</compile_context>

<pallas_src>
import functools

import jax
import jax.numpy as jnp
from jax.experimental import pallas as pl
from jax.experimental.pallas import tpu as pltpu


def _depth_separable_kernel(x_ref, wdw_ref, wpw_ref, o_ref, *,
                            stride, tile_rows, w_in, wo, cin, cout):
    """Produce one (batch, row-tile) slab of the fused depthwise+pointwise conv.

    x_ref  : (1, Cin, H, W)            VMEM (whole image; resident across row tiles)
    wdw_ref: (Cin, 9)                  SMEM (3x3 depthwise taps, row-major kh*3+kw)
    wpw_ref: (Cout, Cin)               SMEM (1x1 pointwise weights)
    o_ref  : (1, Cout, tile_rows, Wo)  VMEM
    """
    t = pl.program_id(1)
    rows_in = (tile_rows - 1) * stride + 3       # input rows feeding this tile
    row_step = tile_rows * stride
    r0 = t * row_step
    if row_step % 8 == 0:
        r0 = pl.multiple_of(r0, 8)               # aligned sublane-offset hint

    # Single load + single f32 cast for the whole tile (hoisted out of the taps).
    x = x_ref[0, :, pl.ds(r0, rows_in), :].astype(jnp.float32)   # (Cin, rows_in, W)

    # For stride > 1, build constant 0/1 selection matrices once (hoisted); the
    # strided decimation is then two small matmuls, which lowers robustly for
    # any stride.  For the default stride == 1 we use plain unit-stride shifts.
    if stride > 1:
        ri = jax.lax.broadcasted_iota(jnp.int32, (tile_rows, rows_in), 0)
        rj = jax.lax.broadcasted_iota(jnp.int32, (tile_rows, rows_in), 1)
        rsel = [(rj == ri * stride + kh).astype(jnp.float32) for kh in range(3)]
        ci = jax.lax.broadcasted_iota(jnp.int32, (w_in, wo), 0)
        cj = jax.lax.broadcasted_iota(jnp.int32, (w_in, wo), 1)
        csel = [(ci == cj * stride + kw).astype(jnp.float32) for kw in range(3)]

    outs = [None] * cout
    for c in range(cin):                         # Cin is tiny (module default: 3)
        xc = x[c]                                # (rows_in, W) f32
        # --- depthwise 3x3 (VALID, stride=s): 9 unrolled scalar*vector mul-adds
        acc = None
        for kh in range(3):
            if stride == 1:
                rows = xc[kh:kh + tile_rows, :]                       # (tile_rows, W)
            else:
                rows = jnp.dot(rsel[kh], xc,
                               preferred_element_type=jnp.float32)    # (tile_rows, W)
            for kw in range(3):
                if stride == 1:
                    patch = rows[:, kw:kw + wo]                       # (tile_rows, Wo)
                else:
                    patch = jnp.dot(rows, csel[kw],
                                    preferred_element_type=jnp.float32)
                term = patch * wdw_ref[c, kh * 3 + kw]                # SMEM scalar * vreg
                acc = term if acc is None else acc + term
        # --- pointwise 1x1: VPU scalar*vector mul-adds (skip a degenerate MXU op)
        for co in range(cout):                   # Cout is tiny (module default: 6)
            contrib = acc * wpw_ref[co, c]
            outs[co] = contrib if outs[co] is None else outs[co] + contrib

    for co in range(cout):
        o_ref[0, co] = outs[co].astype(o_ref.dtype)


def _pick_tile_rows(ho, wo, cout, itemsize, max_block_bytes=2 * 1024 * 1024):
    """Largest legal divisor of Ho (Ho itself, or a multiple of 8) whose output
    block stays under ~2 MiB.  Bigger tiles => fewer grid steps (~0.35 us/step
    overhead); the byte cap keeps the double-buffered blocks safe on v7x's
    64 MiB VMEM.  Falls back to the full output height."""
    def fits(th):
        return cout * th * max(wo, 128) * itemsize <= max_block_bytes

    if fits(ho):
        return ho
    best = None
    for th in range(8, ho, 8):
        if ho % th:
            continue
        if not fits(th):
            continue
        best = th
    return best if best is not None else ho


def depth_separable(x_nchw, w_dw, w_pw, stride=1):
    """Fused DepthSeparable forward.

    x_nchw: (N, Cin, H, W); w_dw: (Cin, 1, 3, 3); w_pw: (Cout, Cin, 1, 1).
    Returns (N, Cout, Ho, Wo) with Ho = (H-3)//stride + 1, Wo = (W-3)//stride + 1.
    """
    n, cin, h, w = x_nchw.shape
    cout = w_pw.shape[0]
    ho = (h - 3) // stride + 1
    wo = (w - 3) // stride + 1

    # Weights: free contiguous reshapes only (27 / Cin*Cout elements).
    wdw = w_dw.reshape(cin, 9).astype(jnp.float32)       # (Cin, 9)
    wpw = w_pw.reshape(cout, cin).astype(jnp.float32)    # (Cout, Cin)

    itemsize = jnp.dtype(x_nchw.dtype).itemsize
    tile_rows = _pick_tile_rows(ho, wo, cout, itemsize)
    n_tiles = ho // tile_rows

    kernel = functools.partial(
        _depth_separable_kernel, stride=stride, tile_rows=tile_rows,
        w_in=w, wo=wo, cin=cin, cout=cout)

    return pl.pallas_call(
        kernel,
        out_shape=jax.ShapeDtypeStruct((n, cout, ho, wo), x_nchw.dtype),
        grid=(n, n_tiles),
        in_specs=[
            # Whole image per batch element; the index_map ignores the row-tile
            # axis, so the image is DMA'd once per batch element and stays
            # resident in VMEM across all of that element's row tiles.
            pl.BlockSpec((1, cin, h, w), lambda b, t: (b, 0, 0, 0)),
            # Tiny weight tables live in SMEM and are read as scalars.
            pl.BlockSpec(memory_space=pltpu.MemorySpace.SMEM),
            pl.BlockSpec(memory_space=pltpu.MemorySpace.SMEM),
        ],
        out_specs=pl.BlockSpec((1, cout, tile_rows, wo),
                               lambda b, t: (b, 0, t, 0)),
        compiler_params=pltpu.CompilerParams(
            dimension_semantics=("parallel", "parallel")),
    )(x_nchw, wdw, wpw)


def _reference(x_nchw, w_dw, w_pw, stride):
    """Pure-JAX/XLA reference matching the PyTorch module."""
    cin = x_nchw.shape[1]
    dw = jax.lax.conv_general_dilated(
        x_nchw, w_dw, window_strides=(stride, stride), padding="VALID",
        feature_group_count=cin,
        dimension_numbers=("NCHW", "OIHW", "NCHW"))
    return jax.lax.conv_general_dilated(
        dw, w_pw, window_strides=(1, 1), padding="VALID",
        dimension_numbers=("NCHW", "OIHW", "NCHW"))


def _run_case(key, n, cin, cout, h, w, stride):
    kx, kdw, kpw = jax.random.split(key, 3)
    x = jax.random.normal(kx, (n, cin, h, w), jnp.float32)
    # PyTorch shapes: depthwise OIHW with groups=Cin -> (Cin, 1, 3, 3);
    # pointwise -> (Cout, Cin, 1, 1).
    w_dw = jax.random.normal(kdw, (cin, 1, 3, 3), jnp.float32) * 0.1
    w_pw = jax.random.normal(kpw, (cout, cin, 1, 1), jnp.float32) * 0.1

    out = jax.block_until_ready(depth_separable(x, w_dw, w_pw, stride=stride))
    ref = jax.block_until_ready(_reference(x, w_dw, w_pw, stride))
    assert out.shape == ref.shape, (out.shape, ref.shape)
    err = float(jnp.max(jnp.abs(out - ref)))
    assert jnp.allclose(out, ref, rtol=1e-5, atol=1e-5), err


if __name__ == "__main__":
    key = jax.random.PRNGKey(0)
    k1, k2 = jax.random.split(key)
    # DepthSeparable defaults (_cin=3, _cout=6, _stride=1); Ho=Wo=16.
    _run_case(k1, n=2, cin=3, cout=6, h=18, w=18, stride=1)
    # Strided variant (_stride=2): exercises the selection-matmul decimation
    # path and the single-row-tile fallback (Ho=Wo=9).
    _run_case(k2, n=2, cin=3, cout=6, h=19, w=19, stride=2)
    print("KERNEL_OK")
</pallas_src>

<mosaic_0001>
module attributes {stable_mosaic.version = 11 : i64} {
  func.func @_depth_separable_kernel(%arg0: i32, %arg1: i32, %arg2: memref<1x3x18x18xf32, #tpu.memory_space<vmem>>, %arg3: memref<3x9xf32, #tpu.memory_space<smem>>, %arg4: memref<6x3xf32, #tpu.memory_space<smem>>, %arg5: memref<1x6x16x16xf32, #tpu.memory_space<vmem>>) attributes {dimension_semantics = [#tpu.dimension_semantics<parallel>, #tpu.dimension_semantics<parallel>], iteration_bounds = array<i64: 2, 1>, scalar_prefetch = 0 : i64, scratch_operands = 0 : i64, tpu.core_type = #tpu.core_type<tc>, window_params = [{transform_indices = @transform_0, window_bounds = array<i64: 1, 3, 18, 18>}, {transform_indices = @transform_1, window_bounds = array<i64: 3, 9>}, {transform_indices = @transform_2, window_bounds = array<i64: 6, 3>}, {transform_indices = @transform_3, window_bounds = array<i64: 1, 6, 16, 16>}]} {
    %c16_i32 = arith.constant 16 : i32
    %0 = arith.muli %arg1, %c16_i32 : i32
    %1 = tpu.assume_multiple %0, 8 : i32
    %c0 = arith.constant 0 : index
    %c0_0 = arith.constant 0 : index
    %2 = arith.index_cast %1 : i32 to index
    %c0_1 = arith.constant 0 : index
    %3 = vector.load %arg2[%c0, %c0_0, %2, %c0_1] : memref<1x3x18x18xf32, #tpu.memory_space<vmem>>, vector<1x3x18x18xf32>
    %4 = vector.shape_cast %3 : vector<1x3x18x18xf32> to vector<3x18x18xf32>
    %5 = vector.extract_strided_slice %4 {offsets = [0, 0, 0], sizes = [1, 18, 18], strides = [1, 1, 1]} : vector<3x18x18xf32> to vector<1x18x18xf32>
    %6 = vector.shape_cast %5 : vector<1x18x18xf32> to vector<18x18xf32>
    %7 = vector.extract_strided_slice %6 {offsets = [0, 0], sizes = [16, 18], strides = [1, 1]} : vector<18x18xf32> to vector<16x18xf32>
    %8 = vector.extract_strided_slice %7 {offsets = [0, 0], sizes = [16, 16], strides = [1, 1]} : vector<16x18xf32> to vector<16x16xf32>
    %c0_2 = arith.constant 0 : index
    %c0_3 = arith.constant 0 : index
    %9 = memref.load %arg3[%c0_2, %c0_3] : memref<3x9xf32, #tpu.memory_space<smem>>
    %10 = vector.broadcast %9 : f32 to vector<16x16xf32>
    %11 = arith.mulf %8, %10 : vector<16x16xf32>
    %12 = vector.extract_strided_slice %7 {offsets = [0, 1], sizes = [16, 16], strides = [1, 1]} : vector<16x18xf32> to vector<16x16xf32>
    %c0_4 = arith.constant 0 : index
    %c1 = arith.constant 1 : index
    %13 = memref.load %arg3[%c0_4, %c1] : memref<3x9xf32, #tpu.memory_space<smem>>
    %14 = vector.broadcast %13 : f32 to vector<16x16xf32>
    %15 = arith.mulf %12, %14 : vector<16x16xf32>
    %16 = arith.addf %11, %15 : vector<16x16xf32>
    %17 = vector.extract_strided_slice %7 {offsets = [0, 2], sizes = [16, 16], strides = [1, 1]} : vector<16x18xf32> to vector<16x16xf32>
    %c0_5 = arith.constant 0 : index
    %c2 = arith.constant 2 : index
    %18 = memref.load %arg3[%c0_5, %c2] : memref<3x9xf32, #tpu.memory_space<smem>>
    %19 = vector.broadcast %18 : f32 to vector<16x16xf32>
    %20 = arith.mulf %17, %19 : vector<16x16xf32>
    %21 = arith.addf %16, %20 : vector<16x16xf32>
    %22 = vector.extract_strided_slice %6 {offsets = [1, 0], sizes = [16, 18], strides = [1, 1]} : vector<18x18xf32> to vector<16x18xf32>
    %23 = vector.extract_strided_slice %22 {offsets = [0, 0], sizes = [16, 16], strides = [1, 1]} : vector<16x18xf32> to vector<16x16xf32>
    %c0_6 = arith.constant 0 : index
    %c3 = arith.constant 3 : index
    %24 = memref.load %arg3[%c0_6, %c3] : memref<3x9xf32, #tpu.memory_space<smem>>
    %25 = vector.broadcast %24 : f32 to vector<16x16xf32>
    %26 = arith.mulf %23, %25 : vector<16x16xf32>
    %27 = arith.addf %21, %26 : vector<16x16xf32>
    %28 = vector.extract_strided_slice %22 {offsets = [0, 1], sizes = [16, 16], strides = [1, 1]} : vector<16x18xf32> to vector<16x16xf32>
    %c0_7 = arith.constant 0 : index
    %c4 = arith.constant 4 : index
    %29 = memref.load %arg3[%c0_7, %c4] : memref<3x9xf32, #tpu.memory_space<smem>>
    %30 = vector.broadcast %29 : f32 to vector<16x16xf32>
    %31 = arith.mulf %28, %30 : vector<16x16xf32>
    %32 = arith.addf %27, %31 : vector<16x16xf32>
    %33 = vector.extract_strided_slice %22 {offsets = [0, 2], sizes = [16, 16], strides = [1, 1]} : vector<16x18xf32> to vector<16x16xf32>
    %c0_8 = arith.constant 0 : index
    %c5 = arith.constant 5 : index
    %34 = memref.load %arg3[%c0_8, %c5] : memref<3x9xf32, #tpu.memory_space<smem>>
    %35 = vector.broadcast %34 : f32 to vector<16x16xf32>
    %36 = arith.mulf %33, %35 : vector<16x16xf32>
    %37 = arith.addf %32, %36 : vector<16x16xf32>
    %38 = vector.extract_strided_slice %6 {offsets = [2, 0], sizes = [16, 18], strides = [1, 1]} : vector<18x18xf32> to vector<16x18xf32>
    %39 = vector.extract_strided_slice %38 {offsets = [0, 0], sizes = [16, 16], strides = [1, 1]} : vector<16x18xf32> to vector<16x16xf32>
    %c0_9 = arith.constant 0 : index
    %c6 = arith.constant 6 : index
    %40 = memref.load %arg3[%c0_9, %c6] : memref<3x9xf32, #tpu.memory_space<smem>>
    %41 = vector.broadcast %40 : f32 to vector<16x16xf32>
    %42 = arith.mulf %39, %41 : vector<16x16xf32>
    %43 = arith.addf %37, %42 : vector<16x16xf32>
    %44 = vector.extract_strided_slice %38 {offsets = [0, 1], sizes = [16, 16], strides = [1, 1]} : vector<16x18xf32> to vector<16x16xf32>
    %c0_10 = arith.constant 0 : index
    %c7 = arith.constant 7 : index
    %45 = memref.load %arg3[%c0_10, %c7] : memref<3x9xf32, #tpu.memory_space<smem>>
    %46 = vector.broadcast %45 : f32 to vector<16x16xf32>
    %47 = arith.mulf %44, %46 : vector<16x16xf32>
    %48 = arith.addf %43, %47 : vector<16x16xf32>
    %49 = vector.extract_strided_slice %38 {offsets = [0, 2], sizes = [16, 16], strides = [1, 1]} : vector<16x18xf32> to vector<16x16xf32>
    %c0_11 = arith.constant 0 : index
    %c8 = arith.constant 8 : index
    %50 = memref.load %arg3[%c0_11, %c8] : memref<3x9xf32, #tpu.memory_space<smem>>
    %51 = vector.broadcast %50 : f32 to vector<16x16xf32>
    %52 = arith.mulf %49, %51 : vector<16x16xf32>
    %53 = arith.addf %48, %52 : vector<16x16xf32>
    %c0_12 = arith.constant 0 : index
    %c0_13 = arith.constant 0 : index
    %54 = memref.load %arg4[%c0_12, %c0_13] : memref<6x3xf32, #tpu.memory_space<smem>>
    %55 = vector.broadcast %54 : f32 to vector<16x16xf32>
    %56 = arith.mulf %53, %55 : vector<16x16xf32>
    %c1_14 = arith.constant 1 : index
    %c0_15 = arith.constant 0 : index
    %57 = memref.load %arg4[%c1_14, %c0_15] : memref<6x3xf32, #tpu.memory_space<smem>>
    %58 = vector.broadcast %57 : f32 to vector<16x16xf32>
    %59 = arith.mulf %53, %58 : vector<16x16xf32>
    %c2_16 = arith.constant 2 : index
    %c0_17 = arith.constant 0 : index
    %60 = memref.load %arg4[%c2_16, %c0_17] : memref<6x3xf32, #tpu.memory_space<smem>>
    %61 = vector.broadcast %60 : f32 to vector<16x16xf32>
    %62 = arith.mulf %53, %61 : vector<16x16xf32>
    %c3_18 = arith.constant 3 : index
    %c0_19 = arith.constant 0 : index
    %63 = memref.load %arg4[%c3_18, %c0_19] : memref<6x3xf32, #tpu.memory_space<smem>>
    %64 = vector.broadcast %63 : f32 to vector<16x16xf32>
    %65 = arith.mulf %53, %64 : vector<16x16xf32>
    %c4_20 = arith.constant 4 : index
    %c0_21 = arith.constant 0 : index
    %66 = memref.load %arg4[%c4_20, %c0_21] : memref<6x3xf32, #tpu.memory_space<smem>>
    %67 = vector.broadcast %66 : f32 to vector<16x16xf32>
    %68 = arith.mulf %53, %67 : vector<16x16xf32>
    %c5_22 = arith.constant 5 : index
    %c0_23 = arith.constant 0 : index
    %69 = memref.load %arg4[%c5_22, %c0_23] : memref<6x3xf32, #tpu.memory_space<smem>>
    %70 = vector.broadcast %69 : f32 to vector<16x16xf32>
    %71 = arith.mulf %53, %70 : vector<16x16xf32>
    %72 = vector.extract_strided_slice %4 {offsets = [1, 0, 0], sizes = [1, 18, 18], strides = [1, 1, 1]} : vector<3x18x18xf32> to vector<1x18x18xf32>
    %73 = vector.shape_cast %72 : vector<1x18x18xf32> to vector<18x18xf32>
    %74 = vector.extract_strided_slice %73 {offsets = [0, 0], sizes = [16, 18], strides = [1, 1]} : vector<18x18xf32> to vector<16x18xf32>
    %75 = vector.extract_strided_slice %74 {offsets = [0, 0], sizes = [16, 16], strides = [1, 1]} : vector<16x18xf32> to vector<16x16xf32>
    %c1_24 = arith.constant 1 : index
    %c0_25 = arith.constant 0 : index
    %76 = memref.load %arg3[%c1_24, %c0_25] : memref<3x9xf32, #tpu.memory_space<smem>>
    %77 = vector.broadcast %76 : f32 to vector<16x16xf32>
    %78 = arith.mulf %75, %77 : vector<16x16xf32>
    %79 = vector.extract_strided_slice %74 {offsets = [0, 1], sizes = [16, 16], strides = [1, 1]} : vector<16x18xf32> to vector<16x16xf32>
    %c1_26 = arith.constant 1 : index
    %c1_27 = arith.constant 1 : index
    %80 = memref.load %arg3[%c1_26, %c1_27] : memref<3x9xf32, #tpu.memory_space<smem>>
    %81 = vector.broadcast %80 : f32 to vector<16x16xf32>
    %82 = arith.mulf %79, %81 : vector<16x16xf32>
    %83 = arith.addf %78, %82 : vector<16x16xf32>
    %84 = vector.extract_strided_slice %74 {offsets = [0, 2], sizes = [16, 16], strides = [1, 1]} : vector<16x18xf32> to vector<16x16xf32>
    %c1_28 = arith.constant 1 : index
    %c2_29 = arith.constant 2 : index
    %85 = memref.load %arg3[%c1_28, %c2_29] : memref<3x9xf32, #tpu.memory_space<smem>>
    %86 = vector.broadcast %85 : f32 to vector<16x16xf32>
    %87 = arith.mulf %84, %86 : vector<16x16xf32>
    %88 = arith.addf %83, %87 : vector<16x16xf32>
    %89 = vector.extract_strided_slice %73 {offsets = [1, 0], sizes = [16, 18], strides = [1, 1]} : vector<18x18xf32> to vector<16x18xf32>
    %90 = vector.extract_strided_slice %89 {offsets = [0, 0], sizes = [16, 16], strides = [1, 1]} : vector<16x18xf32> to vector<16x16xf32>
    %c1_30 = arith.constant 1 : index
    %c3_31 = arith.constant 3 : index
    %91 = memref.load %arg3[%c1_30, %c3_31] : memref<3x9xf32, #tpu.memory_space<smem>>
    %92 = vector.broadcast %91 : f32 to vector<16x16xf32>
    %93 = arith.mulf %90, %92 : vector<16x16xf32>
    %94 = arith.addf %88, %93 : vector<16x16xf32>
    %95 = vector.extract_strided_slice %89 {offsets = [0, 1], sizes = [16, 16], strides = [1, 1]} : vector<16x18xf32> to vector<16x16xf32>
    %c1_32 = arith.constant 1 : index
    %c4_33 = arith.constant 4 : index
    %96 = memref.load %arg3[%c1_32, %c4_33] : memref<3x9xf32, #tpu.memory_space<smem>>
    %97 = vector.broadcast %96 : f32 to vector<16x16xf32>
    %98 = arith.mulf %95, %97 : vector<16x16xf32>
    %99 = arith.addf %94, %98 : vector<16x16xf32>
    %100 = vector.extract_strided_slice %89 {offsets = [0, 2], sizes = [16, 16], strides = [1, 1]} : vector<16x18xf32> to vector<16x16xf32>
    %c1_34 = arith.constant 1 : index
    %c5_35 = arith.constant 5 : index
    %101 = memref.load %arg3[%c1_34, %c5_35] : memref<3x9xf32, #tpu.memory_space<smem>>
    %102 = vector.broadcast %101 : f32 to vector<16x16xf32>
    %103 = arith.mulf %100, %102 : vector<16x16xf32>
    %104 = arith.addf %99, %103 : vector<16x16xf32>
    %105 = vector.extract_strided_slice %73 {offsets = [2, 0], sizes = [16, 18], strides = [1, 1]} : vector<18x18xf32> to vector<16x18xf32>
    %106 = vector.extract_strided_slice %105 {offsets = [0, 0], sizes = [16, 16], strides = [1, 1]} : vector<16x18xf32> to vector<16x16xf32>
    %c1_36 = arith.constant 1 : index
    %c6_37 = arith.constant 6 : index
    %107 = memref.load %arg3[%c1_36, %c6_37] : memref<3x9xf32, #tpu.memory_space<smem>>
    %108 = vector.broadcast %107 : f32 to vector<16x16xf32>
    %109 = arith.mulf %106, %108 : vector<16x16xf32>
    %110 = arith.addf %104, %109 : vector<16x16xf32>
    %111 = vector.extract_strided_slice %105 {offsets = [0, 1], sizes = [16, 16], strides = [1, 1]} : vector<16x18xf32> to vector<16x16xf32>
    %c1_38 = arith.constant 1 : index
    %c7_39 = arith.constant 7 : index
    %112 = memref.load %arg3[%c1_38, %c7_39] : memref<3x9xf32, #tpu.memory_space<smem>>
    %113 = vector.broadcast %112 : f32 to vector<16x16xf32>
    %114 = arith.mulf %111, %113 : vector<16x16xf32>
    %115 = arith.addf %110, %114 : vector<16x16xf32>
    %116 = vector.extract_strided_slice %105 {offsets = [0, 2], sizes = [16, 16], strides = [1, 1]} : vector<16x18xf32> to vector<16x16xf32>
    %c1_40 = arith.constant 1 : index
    %c8_41 = arith.constant 8 : index
    %117 = memref.load %arg3[%c1_40, %c8_41] : memref<3x9xf32, #tpu.memory_space<smem>>
    %118 = vector.broadcast %117 : f32 to vector<16x16xf32>
    %119 = arith.mulf %116, %118 : vector<16x16xf32>
    %120 = arith.addf %115, %119 : vector<16x16xf32>
    %c0_42 = arith.constant 0 : index
    %c1_43 = arith.constant 1 : index
    %121 = memref.load %arg4[%c0_42, %c1_43] : memref<6x3xf32, #tpu.memory_space<smem>>
    %122 = vector.broadcast %121 : f32 to vector<16x16xf32>
    %123 = arith.mulf %120, %122 : vector<16x16xf32>
    %124 = arith.addf %56, %123 : vector<16x16xf32>
    %c1_44 = arith.constant 1 : index
    %c1_45 = arith.constant 1 : index
    %125 = memref.load %arg4[%c1_44, %c1_45] : memref<6x3xf32, #tpu.memory_space<smem>>
    %126 = vector.broadcast %125 : f32 to vector<16x16xf32>
    %127 = arith.mulf %120, %126 : vector<16x16xf32>
    %128 = arith.addf %59, %127 : vector<16x16xf32>
    %c2_46 = arith.constant 2 : index
    %c1_47 = arith.constant 1 : index
    %129 = memref.load %arg4[%c2_46, %c1_47] : memref<6x3xf32, #tpu.memory_space<smem>>
    %130 = vector.broadcast %129 : f32 to vector<16x16xf32>
    %131 = arith.mulf %120, %130 : vector<16x16xf32>
    %132 = arith.addf %62, %131 : vector<16x16xf32>
    %c3_48 = arith.constant 3 : index
    %c1_49 = arith.constant 1 : index
    %133 = memref.load %arg4[%c3_48, %c1_49] : memref<6x3xf32, #tpu.memory_space<smem>>
    %134 = vector.broadcast %133 : f32 to vector<16x16xf32>
    %135 = arith.mulf %120, %134 : vector<16x16xf32>
    %136 = arith.addf %65, %135 : vector<16x16xf32>
    %c4_50 = arith.constant 4 : index
    %c1_51 = arith.constant 1 : index
    %137 = memref.load %arg4[%c4_50, %c1_51] : memref<6x3xf32, #tpu.memory_space<smem>>
    %138 = vector.broadcast %137 : f32 to vector<16x16xf32>
    %139 = arith.mulf %120, %138 : vector<16x16xf32>
    %140 = arith.addf %68, %139 : vector<16x16xf32>
    %c5_52 = arith.constant 5 : index
    %c1_53 = arith.constant 1 : index
    %141 = memref.load %arg4[%c5_52, %c1_53] : memref<6x3xf32, #tpu.memory_space<smem>>
    %142 = vector.broadcast %141 : f32 to vector<16x16xf32>
    %143 = arith.mulf %120, %142 : vector<16x16xf32>
    %144 = arith.addf %71, %143 : vector<16x16xf32>
    %145 = vector.extract_strided_slice %4 {offsets = [2, 0, 0], sizes = [1, 18, 18], strides = [1, 1, 1]} : vector<3x18x18xf32> to vector<1x18x18xf32>
    %146 = vector.shape_cast %145 : vector<1x18x18xf32> to vector<18x18xf32>
    %147 = vector.extract_strided_slice %146 {offsets = [0, 0], sizes = [16, 18], strides = [1, 1]} : vector<18x18xf32> to vector<16x18xf32>
    %148 = vector.extract_strided_slice %147 {offsets = [0, 0], sizes = [16, 16], strides = [1, 1]} : vector<16x18xf32> to vector<16x16xf32>
    %c2_54 = arith.constant 2 : index
    %c0_55 = arith.constant 0 : index
    %149 = memref.load %arg3[%c2_54, %c0_55] : memref<3x9xf32, #tpu.memory_space<smem>>
    %150 = vector.broadcast %149 : f32 to vector<16x16xf32>
    %151 = arith.mulf %148, %150 : vector<16x16xf32>
    %152 = vector.extract_strided_slice %147 {offsets = [0, 1], sizes = [16, 16], strides = [1, 1]} : vector<16x18xf32> to vector<16x16xf32>
    %c2_56 = arith.constant 2 : index
    %c1_57 = arith.constant 1 : index
    %153 = memref.load %arg3[%c2_56, %c1_57] : memref<3x9xf32, #tpu.memory_space<smem>>
    %154 = vector.broadcast %153 : f32 to vector<16x16xf32>
    %155 = arith.mulf %152, %154 : vector<16x16xf32>
    %156 = arith.addf %151, %155 : vector<16x16xf32>
    %157 = vector.extract_strided_slice %147 {offsets = [0, 2], sizes = [16, 16], strides = [1, 1]} : vector<16x18xf32> to vector<16x16xf32>
    %c2_58 = arith.constant 2 : index
    %c2_59 = arith.constant 2 : index
    %158 = memref.load %arg3[%c2_58, %c2_59] : memref<3x9xf32, #tpu.memory_space<smem>>
    %159 = vector.broadcast %158 : f32 to vector<16x16xf32>
    %160 = arith.mulf %157, %159 : vector<16x16xf32>
    %161 = arith.addf %156, %160 : vector<16x16xf32>
    %162 = vector.extract_strided_slice %146 {offsets = [1, 0], sizes = [16, 18], strides = [1, 1]} : vector<18x18xf32> to vector<16x18xf32>
    %163 = vector.extract_strided_slice %162 {offsets = [0, 0], sizes = [16, 16], strides = [1, 1]} : vector<16x18xf32> to vector<16x16xf32>
    %c2_60 = arith.constant 2 : index
    %c3_61 = arith.constant 3 : index
    %164 = memref.load %arg3[%c2_60, %c3_61] : memref<3x9xf32, #tpu.memory_space<smem>>
    %165 = vector.broadcast %164 : f32 to vector<16x16xf32>
    %166 = arith.mulf %163, %165 : vector<16x16xf32>
    %167 = arith.addf %161, %166 : vector<16x16xf32>
    %168 = vector.extract_strided_slice %162 {offsets = [0, 1], sizes = [16, 16], strides = [1, 1]} : vector<16x18xf32> to vector<16x16xf32>
    %c2_62 = arith.constant 2 : index
    %c4_63 = arith.constant 4 : index
    %169 = memref.load %arg3[%c2_62, %c4_63] : memref<3x9xf32, #tpu.memory_space<smem>>
    %170 = vector.broadcast %169 : f32 to vector<16x16xf32>
    %171 = arith.mulf %168, %170 : vector<16x16xf32>
    %172 = arith.addf %167, %171 : vector<16x16xf32>
    %173 = vector.extract_strided_slice %162 {offsets = [0, 2], sizes = [16, 16], strides = [1, 1]} : vector<16x18xf32> to vector<16x16xf32>
    %c2_64 = arith.constant 2 : index
    %c5_65 = arith.constant 5 : index
    %174 = memref.load %arg3[%c2_64, %c5_65] : memref<3x9xf32, #tpu.memory_space<smem>>
    %175 = vector.broadcast %174 : f32 to vector<16x16xf32>
    %176 = arith.mulf %173, %175 : vector<16x16xf32>
    %177 = arith.addf %172, %176 : vector<16x16xf32>
    %178 = vector.extract_strided_slice %146 {offsets = [2, 0], sizes = [16, 18], strides = [1, 1]} : vector<18x18xf32> to vector<16x18xf32>
    %179 = vector.extract_strided_slice %178 {offsets = [0, 0], sizes = [16, 16], strides = [1, 1]} : vector<16x18xf32> to vector<16x16xf32>
    %c2_66 = arith.constant 2 : index
    %c6_67 = arith.constant 6 : index
    %180 = memref.load %arg3[%c2_66, %c6_67] : memref<3x9xf32, #tpu.memory_space<smem>>
    %181 = vector.broadcast %180 : f32 to vector<16x16xf32>
    %182 = arith.mulf %179, %181 : vector<16x16xf32>
    %183 = arith.addf %177, %182 : vector<16x16xf32>
    %184 = vector.extract_strided_slice %178 {offsets = [0, 1], sizes = [16, 16], strides = [1, 1]} : vector<16x18xf32> to vector<16x16xf32>
    %c2_68 = arith.constant 2 : index
    %c7_69 = arith.constant 7 : index
    %185 = memref.load %arg3[%c2_68, %c7_69] : memref<3x9xf32, #tpu.memory_space<smem>>
    %186 = vector.broadcast %185 : f32 to vector<16x16xf32>
    %187 = arith.mulf %184, %186 : vector<16x16xf32>
    %188 = arith.addf %183, %187 : vector<16x16xf32>
    %189 = vector.extract_strided_slice %178 {offsets = [0, 2], sizes = [16, 16], strides = [1, 1]} : vector<16x18xf32> to vector<16x16xf32>
    %c2_70 = arith.constant 2 : index
    %c8_71 = arith.constant 8 : index
    %190 = memref.load %arg3[%c2_70, %c8_71] : memref<3x9xf32, #tpu.memory_space<smem>>
    %191 = vector.broadcast %190 : f32 to vector<16x16xf32>
    %192 = arith.mulf %189, %191 : vector<16x16xf32>
    %193 = arith.addf %188, %192 : vector<16x16xf32>
    %c0_72 = arith.constant 0 : index
    %c2_73 = arith.constant 2 : index
    %194 = memref.load %arg4[%c0_72, %c2_73] : memref<6x3xf32, #tpu.memory_space<smem>>
    %195 = vector.broadcast %194 : f32 to vector<16x16xf32>
    %196 = arith.mulf %193, %195 : vector<16x16xf32>
    %197 = arith.addf %124, %196 : vector<16x16xf32>
    %c1_74 = arith.constant 1 : index
    %c2_75 = arith.constant 2 : index
    %198 = memref.load %arg4[%c1_74, %c2_75] : memref<6x3xf32, #tpu.memory_space<smem>>
    %199 = vector.broadcast %198 : f32 to vector<16x16xf32>
    %200 = arith.mulf %193, %199 : vector<16x16xf32>
    %201 = arith.addf %128, %200 : vector<16x16xf32>
    %c2_76 = arith.constant 2 : index
    %c2_77 = arith.constant 2 : index
    %202 = memref.load %arg4[%c2_76, %c2_77] : memref<6x3xf32, #tpu.memory_space<smem>>
    %203 = vector.broadcast %202 : f32 to vector<16x16xf32>
    %204 = arith.mulf %193, %203 : vector<16x16xf32>
    %205 = arith.addf %132, %204 : vector<16x16xf32>
    %c3_78 = arith.constant 3 : index
    %c2_79 = arith.constant 2 : index
    %206 = memref.load %arg4[%c3_78, %c2_79] : memref<6x3xf32, #tpu.memory_space<smem>>
    %207 = vector.broadcast %206 : f32 to vector<16x16xf32>
    %208 = arith.mulf %193, %207 : vector<16x16xf32>
    %209 = arith.addf %136, %208 : vector<16x16xf32>
    %c4_80 = arith.constant 4 : index
    %c2_81 = arith.constant 2 : index
    %210 = memref.load %arg4[%c4_80, %c2_81] : memref<6x3xf32, #tpu.memory_space<smem>>
    %211 = vector.broadcast %210 : f32 to vector<16x16xf32>
    %212 = arith.mulf %193, %211 : vector<16x16xf32>
    %213 = arith.addf %140, %212 : vector<16x16xf32>
    %c5_82 = arith.constant 5 : index
    %c2_83 = arith.constant 2 : index
    %214 = memref.load %arg4[%c5_82, %c2_83] : memref<6x3xf32, #tpu.memory_space<smem>>
    %215 = vector.broadcast %214 : f32 to vector<16x16xf32>
    %216 = arith.mulf %193, %215 : vector<16x16xf32>
    %217 = arith.addf %144, %216 : vector<16x16xf32>
    %c0_84 = arith.constant 0 : index
    %c0_85 = arith.constant 0 : index
    %c0_86 = arith.constant 0 : index
    %c0_87 = arith.constant 0 : index
    %218 = vector.load %arg5[%c0_84, %c0_85, %c0_86, %c0_87] : memref<1x6x16x16xf32, #tpu.memory_space<vmem>>, vector<1x1x16x16xf32>
    %219 = vector.shape_cast %218 : vector<1x1x16x16xf32> to vector<16x16xf32>
    %220 = vector.shape_cast %197 : vector<16x16xf32> to vector<1x1x16x16xf32>
    tpu.vector_store %arg5[%c0_84, %c0_85, %c0_86, %c0_87], %220 {strides = array<i32>} : memref<1x6x16x16xf32, #tpu.memory_space<vmem>>, vector<1x1x16x16xf32>,
    %c0_88 = arith.constant 0 : index
    %c1_89 = arith.constant 1 : index
    %c0_90 = arith.constant 0 : index
    %c0_91 = arith.constant 0 : index
    %221 = vector.load %arg5[%c0_88, %c1_89, %c0_90, %c0_91] : memref<1x6x16x16xf32, #tpu.memory_space<vmem>>, vector<1x1x16x16xf32>
    %222 = vector.shape_cast %221 : vector<1x1x16x16xf32> to vector<16x16xf32>
    %223 = vector.shape_cast %201 : vector<16x16xf32> to vector<1x1x16x16xf32>
    tpu.vector_store %arg5[%c0_88, %c1_89, %c0_90, %c0_91], %223 {strides = array<i32>} : memref<1x6x16x16xf32, #tpu.memory_space<vmem>>, vector<1x1x16x16xf32>,
    %c0_92 = arith.constant 0 : index
    %c2_93 = arith.constant 2 : index
    %c0_94 = arith.constant 0 : index
    %c0_95 = arith.constant 0 : index
    %224 = vector.load %arg5[%c0_92, %c2_93, %c0_94, %c0_95] : memref<1x6x16x16xf32, #tpu.memory_space<vmem>>, vector<1x1x16x16xf32>
    %225 = vector.shape_cast %224 : vector<1x1x16x16xf32> to vector<16x16xf32>
    %226 = vector.shape_cast %205 : vector<16x16xf32> to vector<1x1x16x16xf32>
    tpu.vector_store %arg5[%c0_92, %c2_93, %c0_94, %c0_95], %226 {strides = array<i32>} : memref<1x6x16x16xf32, #tpu.memory_space<vmem>>, vector<1x1x16x16xf32>,
    %c0_96 = arith.constant 0 : index
    %c3_97 = arith.constant 3 : index
    %c0_98 = arith.constant 0 : index
    %c0_99 = arith.constant 0 : index
    %227 = vector.load %arg5[%c0_96, %c3_97, %c0_98, %c0_99] : memref<1x6x16x16xf32, #tpu.memory_space<vmem>>, vector<1x1x16x16xf32>
    %228 = vector.shape_cast %227 : vector<1x1x16x16xf32> to vector<16x16xf32>
    %229 = vector.shape_cast %209 : vector<16x16xf32> to vector<1x1x16x16xf32>
    tpu.vector_store %arg5[%c0_96, %c3_97, %c0_98, %c0_99], %229 {strides = array<i32>} : memref<1x6x16x16xf32, #tpu.memory_space<vmem>>, vector<1x1x16x16xf32>,
    %c0_100 = arith.constant 0 : index
    %c4_101 = arith.constant 4 : index
    %c0_102 = arith.constant 0 : index
    %c0_103 = arith.constant 0 : index
    %230 = vector.load %arg5[%c0_100, %c4_101, %c0_102, %c0_103] : memref<1x6x16x16xf32, #tpu.memory_space<vmem>>, vector<1x1x16x16xf32>
    %231 = vector.shape_cast %230 : vector<1x1x16x16xf32> to vector<16x16xf32>
    %232 = vector.shape_cast %213 : vector<16x16xf32> to vector<1x1x16x16xf32>
    tpu.vector_store %arg5[%c0_100, %c4_101, %c0_102, %c0_103], %232 {strides = array<i32>} : memref<1x6x16x16xf32, #tpu.memory_space<vmem>>, vector<1x1x16x16xf32>,
    %c0_104 = arith.constant 0 : index
    %c5_105 = arith.constant 5 : index
    %c0_106 = arith.constant 0 : index
    %c0_107 = arith.constant 0 : index
    %233 = vector.load %arg5[%c0_104, %c5_105, %c0_106, %c0_107] : memref<1x6x16x16xf32, #tpu.memory_space<vmem>>, vector<1x1x16x16xf32>
    %234 = vector.shape_cast %233 : vector<1x1x16x16xf32> to vector<16x16xf32>
    %235 = vector.shape_cast %217 : vector<16x16xf32> to vector<1x1x16x16xf32>
    tpu.vector_store %arg5[%c0_104, %c5_105, %c0_106, %c0_107], %235 {strides = array<i32>} : memref<1x6x16x16xf32, #tpu.memory_space<vmem>>, vector<1x1x16x16xf32>,
    return
  }
  func.func @transform_0(%arg0: i32, %arg1: i32) -> (i32, i32, i32, i32) {
    %c0_i32 = arith.constant 0 : i32
    %c0_i32_0 = arith.constant 0 : i32
    %c0_i32_1 = arith.constant 0 : i32
    %c0_i32_2 = arith.constant 0 : i32
    return %arg0, %c0_i32, %c0_i32_0, %c0_i32_1 : i32, i32, i32, i32
  }
  func.func @transform_1(%arg0: i32, %arg1: i32) -> (i32, i32) {
    %c0_i32 = arith.constant 0 : i32
    %c0_i32_0 = arith.constant 0 : i32
    %c0_i32_1 = arith.constant 0 : i32
    return %c0_i32, %c0_i32_0 : i32, i32
  }
  func.func @transform_2(%arg0: i32, %arg1: i32) -> (i32, i32) {
    %c0_i32 = arith.constant 0 : i32
    %c0_i32_0 = arith.constant 0 : i32
    %c0_i32_1 = arith.constant 0 : i32
    return %c0_i32, %c0_i32_0 : i32, i32
  }
  func.func @transform_3(%arg0: i32, %arg1: i32) -> (i32, i32, i32, i32) {
    %c0_i32 = arith.constant 0 : i32
    %c0_i32_0 = arith.constant 0 : i32
    %c0_i32_1 = arith.constant 0 : i32
    return %arg0, %c0_i32, %arg1, %c0_i32_0 : i32, i32, i32, i32
  }
}

</mosaic_0001>

<llo_original>
// kernel: tpu_custom_call.1
$region0: #{tpu_custom_call.1}
  #allocation0 [shape = 'u32[]', space=smem, size = 0x4, offset = 0x4, fixed_abs, tag = 'smem constant byte address 0x4 - core index']
  #allocation1 [shape = 'u32[144,128]{1,0:T(1,128)}', space=vmem, size = 0x12000, scoped, tag = 'internal scratch']
  %s0 = inlined_call_operand.vmem [shape: f32[2,3,18,18], index: 0, kind: input, shape index: {}]
  %s1 = inlined_call_operand.vmem [shape: f32[3,9], index: 1, kind: input, shape index: {}]
  %s2 = inlined_call_operand.vmem [shape: f32[6,3], index: 2, kind: input, shape index: {}]
  %s3 = inlined_call_operand.hbm [shape: f32[2,6,16,16], index: 3, kind: output, shape index: {}]
  %s4 = sld [smem:[#allocation0]]
  $region53: #{tpu_custom_call.1} parent=0
    _
  %s6 = ssub.s32 1, %s4
  %s7 = scalar_select 0, %s6, %s4
  $region1: #{tpu_custom_call.1} parent=0
    #allocation2 [shape = 'u8[2048]{0}', space=smem, size = 0x800, scoped, tag = 'input window, operand 1, single buffered']
    #allocation3 [shape = 's32[2]{0}', space=sflag, size = 0x8, scoped, tag = 'scoped memory for tpu_custom_call.1']
    #allocation4 [shape = 's32[2]{0}', space=sflag, size = 0x8, scoped, tag = 'scoped memory for tpu_custom_call.1']
    #allocation5 [shape = 'u8[4096]{0}', space=smem, size = 0x1000, scoped, tag = 'input window, operand 2, single buffered']
    #allocation6 [shape = 's32[1]{0}', space=sflag, size = 0x4, scoped, tag = 'scoped memory for tpu_custom_call.1']
    #allocation7 [shape = 'u8[98304]{0}', space=vmem, size = 0x18000, scoped, tag = 'output window, operand 0']
    %8 = vsyncpa [#allocation4], 0
    %9 = vsyncpa [#allocation6], 0
    %10 = vsyncpa [#allocation3], 0
    %s11 = scalar_lea.sflag [#allocation3], 1
    %12 = vsyncpa %s11, 0
    loop: start=0, step=1, limit=4
    $region2: #{tpu_custom_call.1} parent=1 // loop_pre_header
      _
    $region3: #{tpu_custom_call.1} parent=1 // loop_header
      %s14 = sphi 0, %s18
      %p15 = scmp.ge.s32.totalorder %s14, 4
      %s21 = sphi 0, %s33
      %s22 = sphi 0, %s29
      %s23 = sphi 0, %s21
      %s24 = sphi 0, %s22
      %s25 = sphi 0, %s23
      %s26 = sphi 0, %s24
      %s36 = sphi 0, %s38
      %s39 = sphi 0, %s36
      %s40 = sphi 0, %s39
      %s56 = sphi 0, %s40
      %s60 = sphi 0, %s60
      %s62 = sphi 0, %s60
      %s63 = sphi 0, %s62
      %s77 = sphi 0, %s63
      %s81 = sphi 0, %s81
      %s83 = sphi 0, %s81
      %s84 = sphi 0, %s83
      %s98 = sphi 0, %s84
      %s106 = sphi 0, %s108
      %s109 = sphi 0, %s106
      %s110 = sphi 0, %s109
      %s126 = sphi 0, %s110
    $region4: #{tpu_custom_call.1} parent=1 // loop_header_branch
      %17 = sbr.rel (%p15) target = $region8
    $region5: #{tpu_custom_call.1} parent=1 // loop_body
      %s19 = ssub.s32 %s14, 1
      %s20 = ssub.s32 %s14, 2
      %s27 = sadd.s32 1, %s22
      %p28 = scmp.ge.s32.totalorder %s27, 1
      %s29 = scalar_select %p28, 0, %s27
      %s30 = sadd.s32 1, %s21
      %s31 = scalar_select %p28, %s30, %s21
      %p32 = scmp.ge.s32.totalorder %s31, 2
      %s33 = scalar_select %p32, 0, %s31
      %s34 = ssub.s32 %s21, %s33
      %p35 = scmp.eq.s32.totalorder %s34, 0
      %s37 = sadd.s32 %s36, 1
      %s38 = scalar_select %p35, %s36, %s37
      %p41 = pneg %p35
      %p42 = scmp.eq.s32.totalorder %s14, 1
      %p43 = por %p41, %p42
      %p44 = scmp.ne.s32.totalorder %s36, %s39
      %p45 = scmp.eq.s32.totalorder %s14, 0
      %p46 = por %p44, %p45
      %p47 = scmp.ne.s32.totalorder %s36, %s39
      %p48 = scmp.eq.s32.totalorder %s19, 1
      %p49 = por %p47, %p48
      %p50 = scmp.ne.s32.totalorder %s39, %s40
      %p51 = scmp.eq.s32.totalorder %s19, 0
      %p52 = por %p50, %p51
      %p53 = scmp.ne.s32.totalorder %s39, %s40
      %p54 = scmp.eq.s32.totalorder %s20, 1
      %p55 = por %p53, %p54
      %p57 = scmp.ne.s32.totalorder %s40, %s56
      %p58 = scmp.eq.s32.totalorder %s20, 0
      %p59 = por %p57, %p58
      %s61 = sadd.s32 %s60, 1
      %p64 = scmp.eq.s32.totalorder %s14, 1
      %p65 = scmp.ne.s32.totalorder %s60, %s62
      %p66 = scmp.eq.s32.totalorder %s14, 0
      %p67 = por %p65, %p66
      %p68 = scmp.ne.s32.totalorder %s60, %s62
      %p69 = scmp.eq.s32.totalorder %s19, 1
      %p70 = por %p68, %p69
      %p71 = scmp.ne.s32.totalorder %s62, %s63
      %p72 = scmp.eq.s32.totalorder %s19, 0
      %p73 = por %p71, %p72
      %p74 = scmp.ne.s32.totalorder %s62, %s63
      %p75 = scmp.eq.s32.totalorder %s20, 1
      %p76 = por %p74, %p75
      %p78 = scmp.ne.s32.totalorder %s63, %s77
      %p79 = scmp.eq.s32.totalorder %s20, 0
      %p80 = por %p78, %p79
      %s82 = sadd.s32 %s81, 1
      %p85 = scmp.eq.s32.totalorder %s14, 1
      %p86 = scmp.ne.s32.totalorder %s81, %s83
      %p87 = scmp.eq.s32.totalorder %s14, 0
      %p88 = por %p86, %p87
      %p89 = scmp.ne.s32.totalorder %s81, %s83
      %p90 = scmp.eq.s32.totalorder %s19, 1
      %p91 = por %p89, %p90
      %p92 = scmp.ne.s32.totalorder %s83, %s84
      %p93 = scmp.eq.s32.totalorder %s19, 0
      %p94 = por %p92, %p93
      %p95 = scmp.ne.s32.totalorder %s83, %s84
      %p96 = scmp.eq.s32.totalorder %s20, 1
      %p97 = por %p95, %p96
      %p99 = scmp.ne.s32.totalorder %s84, %s98
      %p100 = scmp.eq.s32.totalorder %s20, 0
      %p101 = por %p99, %p100
      %s102 = ssub.s32 %s21, %s33
      %s103 = ssub.s32 %s22, %s29
      %s104 = sor.u32 %s102, %s103
      %p105 = scmp.eq.s32.totalorder %s104, 0
      %s107 = sadd.s32 %s106, 1
      %s108 = scalar_select %p105, %s106, %s107
      %p111 = pneg %p105
      %p112 = scmp.eq.s32.totalorder %s14, 1
      %p113 = por %p111, %p112
      %p114 = scmp.ne.s32.totalorder %s106, %s109
      %p115 = scmp.eq.s32.totalorder %s14, 0
      %p116 = por %p114, %p115
      %p117 = scmp.ne.s32.totalorder %s106, %s109
      %p118 = scmp.eq.s32.totalorder %s19, 1
      %p119 = por %p117, %p118
      %p120 = scmp.ne.s32.totalorder %s109, %s110
      %p121 = scmp.eq.s32.totalorder %s19, 0
      %p122 = por %p120, %p121
      %p123 = scmp.ne.s32.totalorder %s109, %s110
      %p124 = scmp.eq.s32.totalorder %s20, 1
      %p125 = por %p123, %p124
      %p127 = scmp.ne.s32.totalorder %s110, %s126
      %p128 = scmp.eq.s32.totalorder %s20, 0
      %p129 = por %p127, %p128
      %p130 = scmp.le.s32.totalorder 1, %s14
      %p131 = scmp.lt.s32.totalorder %s14, 3
      %p132 = pnand %p130, %p131
      %p133 = pneg %p132
      // Predicated region
      $region9: #{tpu_custom_call.1} parent=5 // pred_check
        _
      $region10: #{tpu_custom_call.1} parent=5 // pred_check_branch
        %135 = sbr.rel (%p132) target = $region12
      $region11: #{tpu_custom_call.1} parent=5 // pred_region
        %s136 = ssub.s32 %s14, 1
        // Predicated region
        $region13: #{tpu_custom_call.1} parent=11 // pred_check
          %p137 = pneg %p73
        $region14: #{tpu_custom_call.1} parent=11 // pred_check_branch
          %139 = sbr.rel (%p137) target = $region16
        $region15: #{tpu_custom_call.1} parent=11 // pred_region
          %s141 = ssub.s32 64, 64
          %142 = vsyncadd [#allocation4], %s141
          %s144 = sshll.u32 %s1, 4
          %s145 = int_to_ptr.vmem [resolvable:$true] %s144
          %147 = dma.vmem_to_smem %s145, 64, [#allocation2], [#allocation4]
        $region16: #{tpu_custom_call.1} parent=11 // pred_fallthru
          _
        // Predicated region
        $region17: #{tpu_custom_call.1} parent=11 // pred_check
          %p148 = pneg %p94
        $region18: #{tpu_custom_call.1} parent=11 // pred_check_branch
          %150 = sbr.rel (%p148) target = $region20
        $region19: #{tpu_custom_call.1} parent=11 // pred_region
          %s152 = ssub.s32 128, 128
          %153 = vsyncadd [#allocation6], %s152
          %s155 = sshll.u32 %s2, 4
          %s156 = int_to_ptr.vmem [resolvable:$true] %s155
          %158 = dma.vmem_to_smem %s156, 128, [#allocation5], [#allocation6]
        $region20: #{tpu_custom_call.1} parent=11 // pred_fallthru
          _
      $region12: #{tpu_custom_call.1} parent=5 // pred_fallthru
        _
      %p159 = scmp.lt.s32.totalorder %s14, 2
      // Predicated region
      $region21: #{tpu_custom_call.1} parent=5 // pred_check
        %p160 = pneg %p159
      $region22: #{tpu_custom_call.1} parent=5 // pred_check_branch
        %162 = sbr.rel (%p160) target = $region24
      $region23: #{tpu_custom_call.1} parent=5 // pred_region
        // Predicated region
        $region25: #{tpu_custom_call.1} parent=23 // pred_check
          %p163 = pneg %p46
        $region26: #{tpu_custom_call.1} parent=23 // pred_check_branch
          %165 = sbr.rel (%p163) target = $region28
        $region27: #{tpu_custom_call.1} parent=23 // pred_region
          %p166 = scmp.lt.s32.totalorder %s21, 1
          %s167 = scalar_select %p166, %s21, 1
          %s168 = smul.addr %s167, 9
          %s169 = smul.addr %s168, 8
          %s170 = scalar_lea.vmem %s0, %s169
        $region28: #{tpu_custom_call.1} parent=23 // pred_fallthru
          _
      $region24: #{tpu_custom_call.1} parent=5 // pred_fallthru
        _
      %p171 = scmp.le.s32.totalorder 1, %s14
      %p172 = scmp.lt.s32.totalorder %s14, 3
      %p173 = pnand %p171, %p172
      %p174 = pneg %p173
      // Predicated region
      $region29: #{tpu_custom_call.1} parent=5 // pred_check
        _
      $region30: #{tpu_custom_call.1} parent=5 // pred_check_branch
        %176 = sbr.rel (%p173) target = $region32
      $region31: #{tpu_custom_call.1} parent=5 // pred_region
        %s177 = ssub.s32 %s14, 1
        // Predicated region
        $region33: #{tpu_custom_call.1} parent=31 // pred_check
          %p178 = pneg %p73
        $region34: #{tpu_custom_call.1} parent=31 // pred_check_branch
          %180 = sbr.rel (%p178) target = $region36
        $region35: #{tpu_custom_call.1} parent=31 // pred_region
          %181 = dma.done [#allocation4], 64
        $region36: #{tpu_custom_call.1} parent=31 // pred_fallthru
          _
        // Predicated region
        $region37: #{tpu_custom_call.1} parent=31 // pred_check
          %p182 = pneg %p94
        $region38: #{tpu_custom_call.1} parent=31 // pred_check_branch
          %184 = sbr.rel (%p182) target = $region40
        $region39: #{tpu_custom_call.1} parent=31 // pred_region
          %185 = dma.done [#allocation6], 128
        $region40: #{tpu_custom_call.1} parent=31 // pred_fallthru
          _
        %186 = sfence
        %p187 = scmp.lt.s32.totalorder %s23, 1
        %s188 = scalar_select %p187, %s23, 1
        %s189 = smul.addr %s188, 9
        %s190 = smul.addr %s189, 8
        %s191 = scalar_lea.vmem %s0, %s190
        %p192 = pneg %p52
        %p193 = pneg %p49
        %p194 = pneg %p73
        %p195 = pneg %p70
        %p196 = pneg %p94
        %p197 = pneg %p91
        %p198 = pneg %p122
        %p199 = pneg %p119
        %s200 = sand.u32 %s109, 1
        %s201 = scalar_lea.sflag [#allocation3], %s200
        %s202 = sand.u32 %s109, 1
        %s203 = smul.addr %s202, 96
        %s204 = scalar_lea.vmem [#allocation7], %s203
        %p205 = scmp.lt.s32.totalorder %s23, 1
        %s206 = scalar_select %p205, %s23, 1
        %s207 = smul.addr %s206, 9
        %s208 = smul.addr %s207, 8
        %s209 = scalar_lea.vmem %s0, %s208
        %s210 = smul.u32 2, %s24
        %s211 = smul.u32 %s24, 16
        %s212 = scalar_lea.vmem %s209, %s211
        %v213 = vld [vmem:[%s212] sm:$0xff]
        %v214 = vld [vmem:[%s212 + $0x8] sm:$0xff]
        %v215 = vld [vmem:[%s212 + $0x10] sm:$0x3]
        %v216 = vld [vmem:[%s212 + $0x18] sm:$0xff]
        %v217 = vld [vmem:[%s212 + $0x20] sm:$0xff]
        %v218 = vld [vmem:[%s212 + $0x28] sm:$0x3]
        %v219 = vld [vmem:[%s212 + $0x30] sm:$0xff]
        %v220 = vld [vmem:[%s212 + $0x38] sm:$0xff]
        %v221 = vld [vmem:[%s212 + $0x40] sm:$0x3]
        %s222 = sld [smem:[#allocation2]]
        %v223 = vstv %s222
        %v224 = vmul.f32 %v213, %v223
        %v225 = vmul.f32 %v214, %v223
        %s226 = sld [smem:[#allocation2 + $0x1]]
        %v227 = vstv %s226
        %v228 = vmul.f32 %v213, %v227
        %v229 = vmul.f32 %v214, %v227
        %232 = vrot.lane.b32.xlu0 %v228, 127
        %v233 = vpop.permute.xlu0 %232
        %234 = vrot.lane.b32.xlu0 %v229, 127
        %v235 = vpop.permute.xlu0 %234
        %v238 = vadd.f32 %v224, %v233
        %v239 = vadd.f32 %v225, %v235
        %s240 = sld [smem:[#allocation2 + $0x2]]
        %v241 = vstv %s240
        %v242 = vmul.f32 %v213, %v241
        %v243 = vmul.f32 %v214, %v241
        %246 = vrot.lane.b32.xlu0 %v242, 126
        %v247 = vpop.permute.xlu0 %246
        %248 = vrot.lane.b32.xlu0 %v243, 126
        %v249 = vpop.permute.xlu0 %248
        %v252 = vadd.f32 %v238, %v247
        %v253 = vadd.f32 %v239, %v249
        %s254 = sld [smem:[#allocation2 + $0x3]]
        %v255 = vstv %s254
        %v256 = vmul.f32 %v213, %v255
        %v257 = vmul.f32 %v214, %v255
        %v258 = vmul.f32 %v215, %v255
        %vm262 = vcmask 1046528
        %v263 = vrot.slane %v256, 1
        %v264 = vrot.slane %v257, 1
        %v265 = vsel %vm262, %v263, %v264
        %v266 = vrot.slane %v258, 1
        %v267 = vsel %vm262, %v264, %v266
        %v270 = vadd.f32 %v252, %v265
        %v271 = vadd.f32 %v253, %v267
        %s272 = sld [smem:[#allocation2 + $0x4]]
        %v273 = vstv %s272
        %v274 = vmul.f32 %v213, %v273
        %v275 = vmul.f32 %v214, %v273
        %v276 = vmul.f32 %v215, %v273
        %v280 = vrot.slane %v274, 1
        %v281 = vrot.slane %v275, 1
        %v282 = vsel %vm262, %v280, %v281
        %v283 = vrot.slane %v276, 1
        %v284 = vsel %vm262, %v281, %v283
        %285 = vrot.lane.b32.xlu0 %v282, 127
        %v286 = vpop.permute.xlu0 %285
        %287 = vrot.lane.b32.xlu0 %v284, 127
        %v288 = vpop.permute.xlu0 %287
        %v291 = vadd.f32 %v270, %v286
        %v292 = vadd.f32 %v271, %v288
        %s293 = sld [smem:[#allocation2 + $0x5]]
        %v294 = vstv %s293
        %v295 = vmul.f32 %v213, %v294
        %v296 = vmul.f32 %v214, %v294
        %v297 = vmul.f32 %v215, %v294
        %v301 = vrot.slane %v295, 1
        %v302 = vrot.slane %v296, 1
        %v303 = vsel %vm262, %v301, %v302
        %v304 = vrot.slane %v297, 1
        %v305 = vsel %vm262, %v302, %v304
        %306 = vrot.lane.b32.xlu0 %v303, 126
        %v307 = vpop.permute.xlu0 %306
        %308 = vrot.lane.b32.xlu0 %v305, 126
        %v309 = vpop.permute.xlu0 %308
        %v312 = vadd.f32 %v291, %v307
        %v313 = vadd.f32 %v292, %v309
        %s314 = sld [smem:[#allocation2 + $0x6]]
        %v315 = vstv %s314
        %v316 = vmul.f32 %v213, %v315
        %v317 = vmul.f32 %v214, %v315
        %v318 = vmul.f32 %v215, %v315
        %vm322 = vcmask 1045504
        %v323 = vrot.slane %v316, 2
        %v324 = vrot.slane %v317, 2
        %v325 = vsel %vm322, %v323, %v324
        %v326 = vrot.slane %v318, 2
        %v327 = vsel %vm322, %v324, %v326
        %v330 = vadd.f32 %v312, %v325
        %v331 = vadd.f32 %v313, %v327
        %s332 = sld [smem:[#allocation2 + $0x7]]
        %v333 = vstv %s332
        %v334 = vmul.f32 %v213, %v333
        %v335 = vmul.f32 %v214, %v333
        %v336 = vmul.f32 %v215, %v333
        %v340 = vrot.slane %v334, 2
        %v341 = vrot.slane %v335, 2
        %v342 = vsel %vm322, %v340, %v341
        %v343 = vrot.slane %v336, 2
        %v344 = vsel %vm322, %v341, %v343
        %345 = vrot.lane.b32.xlu0 %v342, 127
        %v346 = vpop.permute.xlu0 %345
        %347 = vrot.lane.b32.xlu0 %v344, 127
        %v348 = vpop.permute.xlu0 %347
        %v351 = vadd.f32 %v330, %v346
        %v352 = vadd.f32 %v331, %v348
        %s353 = sld [smem:[#allocation2 + $0x8]]
        %v354 = vstv %s353
        %v355 = vmul.f32 %v213, %v354
        %v356 = vmul.f32 %v214, %v354
        %v357 = vmul.f32 %v215, %v354
        %v361 = vrot.slane %v355, 2
        %v362 = vrot.slane %v356, 2
        %v363 = vsel %vm322, %v361, %v362
        %v364 = vrot.slane %v357, 2
        %v365 = vsel %vm322, %v362, %v364
        %366 = vrot.lane.b32.xlu0 %v363, 126
        %v367 = vpop.permute.xlu0 %366
        %368 = vrot.lane.b32.xlu0 %v365, 126
        %v369 = vpop.permute.xlu0 %368
        %v372 = vadd.f32 %v351, %v367
        %v373 = vadd.f32 %v352, %v369
        %s374 = sld [smem:[#allocation5]]
        %v375 = vstv %s374
        %v376 = vmul.f32 %v372, %v375
        %v377 = vmul.f32 %v373, %v375
        %s378 = sld [smem:[#allocation5 + $0x80]]
        %v379 = vstv %s378
        %v380 = vmul.f32 %v372, %v379
        %v381 = vmul.f32 %v373, %v379
        %s382 = sld [smem:[#allocation5 + $0x100]]
        %v383 = vstv %s382
        %v384 = vmul.f32 %v372, %v383
        %v385 = vmul.f32 %v373, %v383
        %s386 = sld [smem:[#allocation5 + $0x180]]
        %v387 = vstv %s386
        %v388 = vmul.f32 %v372, %v387
        %v389 = vmul.f32 %v373, %v387
        %s390 = sld [smem:[#allocation5 + $0x200]]
        %v391 = vstv %s390
        %v392 = vmul.f32 %v372, %v391
        %v393 = vmul.f32 %v373, %v391
        %s394 = sld [smem:[#allocation5 + $0x280]]
        %v395 = vstv %s394
        %v396 = vmul.f32 %v372, %v395
        %v397 = vmul.f32 %v373, %v395
        %s398 = sld [smem:[#allocation2 + $0x80]]
        %v399 = vstv %s398
        %v400 = vmul.f32 %v216, %v399
        %v401 = vmul.f32 %v217, %v399
        %s402 = sld [smem:[#allocation2 + $0x81]]
        %v403 = vstv %s402
        %v404 = vmul.f32 %v216, %v403
        %v405 = vmul.f32 %v217, %v403
        %408 = vrot.lane.b32.xlu0 %v404, 127
        %v409 = vpop.permute.xlu0 %408
        %410 = vrot.lane.b32.xlu0 %v405, 127
        %v411 = vpop.permute.xlu0 %410
        %v414 = vadd.f32 %v400, %v409
        %v415 = vadd.f32 %v401, %v411
        %s416 = sld [smem:[#allocation2 + $0x82]]
        %v417 = vstv %s416
        %v418 = vmul.f32 %v216, %v417
        %v419 = vmul.f32 %v217, %v417
        %422 = vrot.lane.b32.xlu0 %v418, 126
        %v423 = vpop.permute.xlu0 %422
        %424 = vrot.lane.b32.xlu0 %v419, 126
        %v425 = vpop.permute.xlu0 %424
        %v428 = vadd.f32 %v414, %v423
        %v429 = vadd.f32 %v415, %v425
        %s430 = sld [smem:[#allocation2 + $0x83]]
        %v431 = vstv %s430
        %v432 = vmul.f32 %v216, %v431
        %v433 = vmul.f32 %v217, %v431
        %v434 = vmul.f32 %v218, %v431
        %v438 = vrot.slane %v432, 1
        %v439 = vrot.slane %v433, 1
        %v440 = vsel %vm262, %v438, %v439
        %v441 = vrot.slane %v434, 1
        %v442 = vsel %vm262, %v439, %v441
        %v445 = vadd.f32 %v428, %v440
        %v446 = vadd.f32 %v429, %v442
        %s447 = sld [smem:[#allocation2 + $0x84]]
        %v448 = vstv %s447
        %v449 = vmul.f32 %v216, %v448
        %v450 = vmul.f32 %v217, %v448
        %v451 = vmul.f32 %v218, %v448
        %v455 = vrot.slane %v449, 1
        %v456 = vrot.slane %v450, 1
        %v457 = vsel %vm262, %v455, %v456
        %v458 = vrot.slane %v451, 1
        %v459 = vsel %vm262, %v456, %v458
        %460 = vrot.lane.b32.xlu0 %v457, 127
        %v461 = vpop.permute.xlu0 %460
        %462 = vrot.lane.b32.xlu0 %v459, 127
        %v463 = vpop.permute.xlu0 %462
        %v466 = vadd.f32 %v445, %v461
        %v467 = vadd.f32 %v446, %v463
        %s468 = sld [smem:[#allocation2 + $0x85]]
        %v469 = vstv %s468
        %v470 = vmul.f32 %v216, %v469
        %v471 = vmul.f32 %v217, %v469
        %v472 = vmul.f32 %v218, %v469
        %v476 = vrot.slane %v470, 1
        %v477 = vrot.slane %v471, 1
        %v478 = vsel %vm262, %v476, %v477
        %v479 = vrot.slane %v472, 1
        %v480 = vsel %vm262, %v477, %v479
        %481 = vrot.lane.b32.xlu0 %v478, 126
        %v482 = vpop.permute.xlu0 %481
        %483 = vrot.lane.b32.xlu0 %v480, 126
        %v484 = vpop.permute.xlu0 %483
        %v487 = vadd.f32 %v466, %v482
        %v488 = vadd.f32 %v467, %v484
        %s489 = sld [smem:[#allocation2 + $0x86]]
        %v490 = vstv %s489
        %v491 = vmul.f32 %v216, %v490
        %v492 = vmul.f32 %v217, %v490
        %v493 = vmul.f32 %v218, %v490
        %v497 = vrot.slane %v491, 2
        %v498 = vrot.slane %v492, 2
        %v499 = vsel %vm322, %v497, %v498
        %v500 = vrot.slane %v493, 2
        %v501 = vsel %vm322, %v498, %v500
        %v504 = vadd.f32 %v487, %v499
        %v505 = vadd.f32 %v488, %v501
        %s506 = sld [smem:[#allocation2 + $0x87]]
        %v507 = vstv %s506
        %v508 = vmul.f32 %v216, %v507
        %v509 = vmul.f32 %v217, %v507
        %v510 = vmul.f32 %v218, %v507
        %v514 = vrot.slane %v508, 2
        %v515 = vrot.slane %v509, 2
        %v516 = vsel %vm322, %v514, %v515
        %v517 = vrot.slane %v510, 2
        %v518 = vsel %vm322, %v515, %v517
        %519 = vrot.lane.b32.xlu0 %v516, 127
        %v520 = vpop.permute.xlu0 %519
        %521 = vrot.lane.b32.xlu0 %v518, 127
        %v522 = vpop.permute.xlu0 %521
        %v525 = vadd.f32 %v504, %v520
        %v526 = vadd.f32 %v505, %v522
        %s527 = sld [smem:[#allocation2 + $0x88]]
        %v528 = vstv %s527
        %v529 = vmul.f32 %v216, %v528
        %v530 = vmul.f32 %v217, %v528
        %v531 = vmul.f32 %v218, %v528
        %v535 = vrot.slane %v529, 2
        %v536 = vrot.slane %v530, 2
        %v537 = vsel %vm322, %v535, %v536
        %v538 = vrot.slane %v531, 2
        %v539 = vsel %vm322, %v536, %v538
        %540 = vrot.lane.b32.xlu0 %v537, 126
        %v541 = vpop.permute.xlu0 %540
        %542 = vrot.lane.b32.xlu0 %v539, 126
        %v543 = vpop.permute.xlu0 %542
        %v546 = vadd.f32 %v525, %v541
        %v547 = vadd.f32 %v526, %v543
        %s548 = sld [smem:[#allocation5 + $0x1]]
        %v549 = vstv %s548
        %v550 = vmul.f32 %v546, %v549
        %v551 = vmul.f32 %v547, %v549
        %v552 = vadd.f32 %v376, %v550
        %v553 = vadd.f32 %v377, %v551
        %s554 = sld [smem:[#allocation5 + $0x81]]
        %v555 = vstv %s554
        %v556 = vmul.f32 %v546, %v555
        %v557 = vmul.f32 %v547, %v555
        %v558 = vadd.f32 %v380, %v556
        %v559 = vadd.f32 %v381, %v557
        %s560 = sld [smem:[#allocation5 + $0x101]]
        %v561 = vstv %s560
        %v562 = vmul.f32 %v546, %v561
        %v563 = vmul.f32 %v547, %v561
        %v564 = vadd.f32 %v384, %v562
        %v565 = vadd.f32 %v385, %v563
        %s566 = sld [smem:[#allocation5 + $0x181]]
        %v567 = vstv %s566
        %v568 = vmul.f32 %v546, %v567
        %v569 = vmul.f32 %v547, %v567
        %v570 = vadd.f32 %v388, %v568
        %v571 = vadd.f32 %v389, %v569
        %s572 = sld [smem:[#allocation5 + $0x201]]
        %v573 = vstv %s572
        %v574 = vmul.f32 %v546, %v573
        %v575 = vmul.f32 %v547, %v573
        %v576 = vadd.f32 %v392, %v574
        %v577 = vadd.f32 %v393, %v575
        %s578 = sld [smem:[#allocation5 + $0x281]]
        %v579 = vstv %s578
        %v580 = vmul.f32 %v546, %v579
        %v581 = vmul.f32 %v547, %v579
        %v582 = vadd.f32 %v396, %v580
        %v583 = vadd.f32 %v397, %v581
        %s584 = sld [smem:[#allocation2 + $0x100]]
        %v585 = vstv %s584
        %v586 = vmul.f32 %v219, %v585
        %v587 = vmul.f32 %v220, %v585
        %s588 = sld [smem:[#allocation2 + $0x101]]
        %v589 = vstv %s588
        %v590 = vmul.f32 %v219, %v589
        %v591 = vmul.f32 %v220, %v589
        %594 = vrot.lane.b32.xlu0 %v590, 127
        %v595 = vpop.permute.xlu0 %594
        %596 = vrot.lane.b32.xlu0 %v591, 127
        %v597 = vpop.permute.xlu0 %596
        %v600 = vadd.f32 %v586, %v595
        %v601 = vadd.f32 %v587, %v597
        %s602 = sld [smem:[#allocation2 + $0x102]]
        %v603 = vstv %s602
        %v604 = vmul.f32 %v219, %v603
        %v605 = vmul.f32 %v220, %v603
        %608 = vrot.lane.b32.xlu0 %v604, 126
        %v609 = vpop.permute.xlu0 %608
        %610 = vrot.lane.b32.xlu0 %v605, 126
        %v611 = vpop.permute.xlu0 %610
        %v614 = vadd.f32 %v600, %v609
        %v615 = vadd.f32 %v601, %v611
        %s616 = sld [smem:[#allocation2 + $0x103]]
        %v617 = vstv %s616
        %v618 = vmul.f32 %v219, %v617
        %v619 = vmul.f32 %v220, %v617
        %v620 = vmul.f32 %v221, %v617
        %v624 = vrot.slane %v618, 1
        %v625 = vrot.slane %v619, 1
        %v626 = vsel %vm262, %v624, %v625
        %v627 = vrot.slane %v620, 1
        %v628 = vsel %vm262, %v625, %v627
        %v631 = vadd.f32 %v614, %v626
        %v632 = vadd.f32 %v615, %v628
        %s633 = sld [smem:[#allocation2 + $0x104]]
        %v634 = vstv %s633
        %v635 = vmul.f32 %v219, %v634
        %v636 = vmul.f32 %v220, %v634
        %v637 = vmul.f32 %v221, %v634
        %v641 = vrot.slane %v635, 1
        %v642 = vrot.slane %v636, 1
        %v643 = vsel %vm262, %v641, %v642
        %v644 = vrot.slane %v637, 1
        %v645 = vsel %vm262, %v642, %v644
        %646 = vrot.lane.b32.xlu0 %v643, 127
        %v647 = vpop.permute.xlu0 %646
        %648 = vrot.lane.b32.xlu0 %v645, 127
        %v649 = vpop.permute.xlu0 %648
        %v652 = vadd.f32 %v631, %v647
        %v653 = vadd.f32 %v632, %v649
        %s654 = sld [smem:[#allocation2 + $0x105]]
        %v655 = vstv %s654
        %v656 = vmul.f32 %v219, %v655
        %v657 = vmul.f32 %v220, %v655
        %v658 = vmul.f32 %v221, %v655
        %v662 = vrot.slane %v656, 1
        %v663 = vrot.slane %v657, 1
        %v664 = vsel %vm262, %v662, %v663
        %v665 = vrot.slane %v658, 1
        %v666 = vsel %vm262, %v663, %v665
        %667 = vrot.lane.b32.xlu0 %v664, 126
        %v668 = vpop.permute.xlu0 %667
        %669 = vrot.lane.b32.xlu0 %v666, 126
        %v670 = vpop.permute.xlu0 %669
        %v673 = vadd.f32 %v652, %v668
        %v674 = vadd.f32 %v653, %v670
        %s675 = sld [smem:[#allocation2 + $0x106]]
        %v676 = vstv %s675
        %v677 = vmul.f32 %v219, %v676
        %v678 = vmul.f32 %v220, %v676
        %v679 = vmul.f32 %v221, %v676
        %v683 = vrot.slane %v677, 2
        %v684 = vrot.slane %v678, 2
        %v685 = vsel %vm322, %v683, %v684
        %v686 = vrot.slane %v679, 2
        %v687 = vsel %vm322, %v684, %v686
        %v690 = vadd.f32 %v673, %v685
        %v691 = vadd.f32 %v674, %v687
        %s692 = sld [smem:[#allocation2 + $0x107]]
        %v693 = vstv %s692
        %v694 = vmul.f32 %v219, %v693
        %v695 = vmul.f32 %v220, %v693
        %v696 = vmul.f32 %v221, %v693
        %v700 = vrot.slane %v694, 2
        %v701 = vrot.slane %v695, 2
        %v702 = vsel %vm322, %v700, %v701
        %v703 = vrot.slane %v696, 2
        %v704 = vsel %vm322, %v701, %v703
        %705 = vrot.lane.b32.xlu0 %v702, 127
        %v706 = vpop.permute.xlu0 %705
        %707 = vrot.lane.b32.xlu0 %v704, 127
        %v708 = vpop.permute.xlu0 %707
        %v711 = vadd.f32 %v690, %v706
        %v712 = vadd.f32 %v691, %v708
        %s713 = sld [smem:[#allocation2 + $0x108]]
        %v714 = vstv %s713
        %v715 = vmul.f32 %v219, %v714
        %v716 = vmul.f32 %v220, %v714
        %v717 = vmul.f32 %v221, %v714
        %v721 = vrot.slane %v715, 2
        %v722 = vrot.slane %v716, 2
        %v723 = vsel %vm322, %v721, %v722
        %v724 = vrot.slane %v717, 2
        %v725 = vsel %vm322, %v722, %v724
        %726 = vrot.lane.b32.xlu0 %v723, 126
        %v727 = vpop.permute.xlu0 %726
        %728 = vrot.lane.b32.xlu0 %v725, 126
        %v729 = vpop.permute.xlu0 %728
        %v732 = vadd.f32 %v711, %v727
        %v733 = vadd.f32 %v712, %v729
        %s734 = sld [smem:[#allocation5 + $0x2]]
        %v735 = vstv %s734
        %v736 = vmul.f32 %v732, %v735
        %v737 = vmul.f32 %v733, %v735
        %v738 = vadd.f32 %v552, %v736
        %v739 = vadd.f32 %v553, %v737
        %s740 = sld [smem:[#allocation5 + $0x82]]
        %v741 = vstv %s740
        %v742 = vmul.f32 %v732, %v741
        %v743 = vmul.f32 %v733, %v741
        %v744 = vadd.f32 %v558, %v742
        %v745 = vadd.f32 %v559, %v743
        %s746 = sld [smem:[#allocation5 + $0x102]]
        %v747 = vstv %s746
        %v748 = vmul.f32 %v732, %v747
        %v749 = vmul.f32 %v733, %v747
        %v750 = vadd.f32 %v564, %v748
        %v751 = vadd.f32 %v565, %v749
        %s752 = sld [smem:[#allocation5 + $0x182]]
        %v753 = vstv %s752
        %v754 = vmul.f32 %v732, %v753
        %v755 = vmul.f32 %v733, %v753
        %v756 = vadd.f32 %v570, %v754
        %v757 = vadd.f32 %v571, %v755
        %s758 = sld [smem:[#allocation5 + $0x202]]
        %v759 = vstv %s758
        %v760 = vmul.f32 %v732, %v759
        %v761 = vmul.f32 %v733, %v759
        %v762 = vadd.f32 %v576, %v760
        %v763 = vadd.f32 %v577, %v761
        %s764 = sld [smem:[#allocation5 + $0x282]]
        %v765 = vstv %s764
        %v766 = vmul.f32 %v732, %v765
        %v767 = vmul.f32 %v733, %v765
        %v768 = vadd.f32 %v582, %v766
        %v769 = vadd.f32 %v583, %v767
        %vm770 = vcmask 130048
        %771 = vst.msk [vmem:[%s204] sm:$0xff] %vm770, %v738
        %772 = vst.msk [vmem:[%s204 + $0x8] sm:$0xff] %vm770, %v739
        %s773 = scalar_lea.vmem %s204, 16 [#allocation7]
        %774 = vst.msk [vmem:[%s773] sm:$0xff] %vm770, %v744
        %775 = vst.msk [vmem:[%s773 + $0x8] sm:$0xff] %vm770, %v745
        %s776 = scalar_lea.vmem %s204, 32 [#allocation7]
        %777 = vst.msk [vmem:[%s776] sm:$0xff] %vm770, %v750
        %778 = vst.msk [vmem:[%s776 + $0x8] sm:$0xff] %vm770, %v751
        %s779 = scalar_lea.vmem %s204, 48 [#allocation7]
        %780 = vst.msk [vmem:[%s779] sm:$0xff] %vm770, %v756
        %781 = vst.msk [vmem:[%s779 + $0x8] sm:$0xff] %vm770, %v757
        %s782 = scalar_lea.vmem %s204, 64 [#allocation7]
        %783 = vst.msk [vmem:[%s782] sm:$0xff] %vm770, %v762
        %784 = vst.msk [vmem:[%s782 + $0x8] sm:$0xff] %vm770, %v763
        %s785 = scalar_lea.vmem %s204, 80 [#allocation7]
        %786 = vst.msk [vmem:[%s785] sm:$0xff] %vm770, %v768
        %787 = vst.msk [vmem:[%s785 + $0x8] sm:$0xff] %vm770, %v769
        %s788 = sand.u32 %s109, 1
        %s789 = scalar_lea.sflag [#allocation3], %s788
        %s790 = sand.u32 %s109, 1
        %s791 = smul.addr %s790, 96
        %s792 = scalar_lea.vmem [#allocation7], %s791
        // Predicated region
        $region41: #{tpu_custom_call.1} parent=31 // pred_check
          %p793 = pneg %p119
        $region42: #{tpu_custom_call.1} parent=31 // pred_check_branch
          %795 = sbr.rel (%p793) target = $region44
        $region43: #{tpu_custom_call.1} parent=31 // pred_region
          %s796 = smul.u32 2, %s24
          %s798 = ssub.s32 1536, 1536
          %799 = vsyncadd %s789, %s798
          %s800 = smul.addr %s23, 12
          %s801 = sadd.s32 %s796, %s800
          %s802 = smul.addr %s801, 128
          %s803 = scalar_lea.hbm %s3, %s802
          %s804 = sshll.u32 %s792, 4
          %s805 = int_to_ptr.vmem [resolvable:$true] %s804
          %810 = dma.vmem_to_hbm [thread:$0]  %s805, 1536, %s803, %s789, 128, 128, 8
        $region44: #{tpu_custom_call.1} parent=31 // pred_fallthru
          _
      $region32: #{tpu_custom_call.1} parent=5 // pred_fallthru
        _
      %p811 = scmp.le.s32.totalorder 2, %s14
      // Predicated region
      $region45: #{tpu_custom_call.1} parent=5 // pred_check
        %p812 = pneg %p811
      $region46: #{tpu_custom_call.1} parent=5 // pred_check_branch
        %814 = sbr.rel (%p812) target = $region48
      $region47: #{tpu_custom_call.1} parent=5 // pred_region
        %s815 = ssub.s32 %s14, 2
        // Predicated region
        $region49: #{tpu_custom_call.1} parent=47 // pred_check
          %p816 = pneg %p125
        $region50: #{tpu_custom_call.1} parent=47 // pred_check_branch
          %818 = sbr.rel (%p816) target = $region52
        $region51: #{tpu_custom_call.1} parent=47 // pred_region
          %s819 = sand.u32 %s110, 1
          %s820 = scalar_lea.sflag [#allocation3], %s819
          %s821 = sand.u32 %s110, 1
          %s822 = smul.addr %s821, 96
          %s823 = scalar_lea.vmem [#allocation7], %s822
          %824 = dma.done %s820, 1536
        $region52: #{tpu_custom_call.1} parent=47 // pred_fallthru
          _
      $region48: #{tpu_custom_call.1} parent=5 // pred_fallthru
        _
    $region6: #{tpu_custom_call.1} parent=1 // loop_footer
      %s18 = sadd.s32 1, %s14
    $region7: #{tpu_custom_call.1} parent=1 // loop_footer_branch
      %13 = sbr.rel target = $region3
    $region8: #{tpu_custom_call.1} parent=1 // loop_exit
      _
    %825 = vsyncpa [#allocation3], 1
    %s826 = scalar_lea.sflag [#allocation3], 1
    %827 = vsyncpa %s826, 1
    %828 = vsyncpa [#allocation4], 1
    %s829 = scalar_lea.sflag [#allocation4], 1
    %830 = vsyncpa %s829, 1
    %831 = vsyncpa [#allocation6], 1

</llo_original>
